<compile_context>
chip_gen: v7x
topology: tpu7x:2x2x1
jax: 0.10.0
libtpu: 0.0.40
codegen_flags: <defaults>
</compile_context>

<pallas_src>
import functools
import math

import jax
import jax.numpy as jnp
import numpy as np
from jax.experimental import pallas as pl
from jax.experimental.pallas import tpu as pltpu


# ---------------------------------------------------------------------------
# Parameter / buffer construction (glue, plain JAX)
# ---------------------------------------------------------------------------
def make_positional_encoding_table(d_model: int, max_len: int = 5000) -> jnp.ndarray:
    """Replicates the `pe` buffer from the PyTorch module: shape (max_len, 1, d_model)."""
    position = jnp.arange(0, max_len, dtype=jnp.float32)[:, None]             # (max_len, 1)
    div_term = jnp.exp(
        jnp.arange(0, d_model, 2, dtype=jnp.float32) * (-math.log(10000.0) / d_model)
    )                                                                          # (d_model/2,)
    pe = jnp.zeros((max_len, d_model), dtype=jnp.float32)
    pe = pe.at[:, 0::2].set(jnp.sin(position * div_term))
    pe = pe.at[:, 1::2].set(jnp.cos(position * div_term))
    return pe[:, None, :]                                                      # (max_len, 1, d_model)


# ---------------------------------------------------------------------------
# Pallas kernels
# ---------------------------------------------------------------------------
def _broadcast_pe_lanes(pe, batch):
    # pe: (ts, D) -> (ts, batch*D), matching x.reshape(S, B*D) layout (b-major, d-minor).
    # Lane-dim concat is the supported replacement for pltpu.repeat (jnp.tile semantics).
    if batch == 1:
        return pe
    return jnp.concatenate([pe] * batch, axis=-1)


def _pe_add_kernel(x_ref, pe_ref, o_ref, *, batch):
    # Eval-mode forward: x + pe (dropout is identity in eval).
    o_ref[...] = x_ref[...] + _broadcast_pe_lanes(pe_ref[...], batch)


def _pe_add_dropout_kernel(x_ref, pe_ref, r_ref, o_ref, *, batch, keep_threshold,
                           inv_keep_prob):
    # Training-mode forward: inverted dropout(x + pe).
    # r_ref holds int32 uniform values in [0, 2^31); keep iff r < keep_prob * 2^31
    # (integer-threshold compare: no int->float cast, no extra vmul).
    y = x_ref[...] + _broadcast_pe_lanes(pe_ref[...], batch)
    keep = r_ref[...] < keep_threshold
    o_ref[...] = jnp.where(keep, y * inv_keep_prob, 0.0).astype(o_ref.dtype)


# ---------------------------------------------------------------------------
# Wrapper
# ---------------------------------------------------------------------------
def _auto_seq_tile(seq_len: int, row_bytes: int, target_bytes: int = 2 << 20) -> int:
    """Largest seq tile (multiple of 8) such that one block is ~target_bytes."""
    if seq_len <= 8:
        return seq_len
    ts = max(8, target_bytes // max(row_bytes, 1))
    ts = int(min(ts, seq_len))
    ts -= ts % 8
    return max(ts, 8)


def positional_encoding(x, pe_table, *, dropout_p=0.1, training=False, seed=0,
                        seq_tile=None, target_block_bytes=2 << 20):
    """
    x:        (S, B, D) float32
    pe_table: (max_len, 1, D) float32  (from make_positional_encoding_table)
    """
    S, B, D = x.shape
    assert pe_table.ndim == 3 and pe_table.shape[1] == 1 and pe_table.shape[2] == D
    assert S <= pe_table.shape[0]

    itemsize = jnp.dtype(x.dtype).itemsize
    row_bytes = B * D * itemsize
    ts = seq_tile if seq_tile is not None else _auto_seq_tile(S, row_bytes,
                                                              target_block_bytes)
    ts = int(min(ts, S))
    grid = (pl.cdiv(S, ts),)

    # Lane-dense layout: merge (B, D) into a single lane dimension.
    x2 = x.reshape(S, B * D)
    pe2 = pe_table[:S, 0, :].astype(x.dtype)                       # (S, D)

    x_spec = pl.BlockSpec((ts, B * D), lambda i: (i, 0))
    pe_spec = pl.BlockSpec((ts, D), lambda i: (i, 0))
    r_spec = pl.BlockSpec((ts, B * D), lambda i: (i, 0))
    out_spec = pl.BlockSpec((ts, B * D), lambda i: (i, 0))
    out_shape = jax.ShapeDtypeStruct((S, B * D), x.dtype)

    use_dropout = training and dropout_p > 0.0
    if training and dropout_p >= 1.0:
        return jnp.zeros_like(x)

    # VMEM budget: double-buffered big streams (x, out, [rand]) + small pe stream.
    block_bytes = ts * B * D * itemsize
    pe_bytes = ts * D * itemsize
    n_big = 3 if use_dropout else 2
    vmem_limit = int(min(max(2 * (n_big * block_bytes + pe_bytes) + (4 << 20),
                             16 << 20), 40 << 20))

    compiler_params = pltpu.CompilerParams(
        dimension_semantics=("parallel",),       # distinct output block per grid step
        vmem_limit_bytes=vmem_limit,
    )

    if not use_dropout:
        out2 = pl.pallas_call(
            functools.partial(_pe_add_kernel, batch=B),
            out_shape=out_shape,
            grid_spec=pltpu.PrefetchScalarGridSpec(
                num_scalar_prefetch=0,
                grid=grid,
                in_specs=[x_spec, pe_spec],
                out_specs=out_spec,
            ),
            compiler_params=compiler_params,
        )(x2, pe2)
        return out2.reshape(S, B, D)

    keep_prob = 1.0 - float(dropout_p)
    keep_threshold = min(int(round(keep_prob * (1 << 31))), (1 << 31) - 1)
    # TODO(synk): on-chip PRNG (pltpu.prng_seed/prng_random_bits) would remove this
    # HBM stream on real TPU but has no interpret-mode lowering; also PyTorch's
    # dropout RNG stream cannot be reproduced bit-exactly, so masks differ anyway.
    rbits = jax.random.bits(jax.random.PRNGKey(seed), (S, B * D), dtype=jnp.uint32)
    r31 = (rbits >> 1).astype(jnp.int32)                             # uniform in [0, 2^31)

    out2 = pl.pallas_call(
        functools.partial(_pe_add_dropout_kernel, batch=B,
                          keep_threshold=keep_threshold,
                          inv_keep_prob=1.0 / keep_prob),
        out_shape=out_shape,
        grid_spec=pltpu.PrefetchScalarGridSpec(
            num_scalar_prefetch=0,
            grid=grid,
            in_specs=[x_spec, pe_spec, r_spec],
            out_specs=out_spec,
        ),
        compiler_params=compiler_params,
    )(x2, pe2, r31)
    return out2.reshape(S, B, D)


# ---------------------------------------------------------------------------
# Demo / self-test
# ---------------------------------------------------------------------------
if __name__ == "__main__":
    key = jax.random.PRNGKey(0)
    S, B, D = 8, 2, 32          # (seq, batch, d_model)
    max_len = 64

    x = jax.random.normal(key, (S, B, D), dtype=jnp.float32)
    pe_table = make_positional_encoding_table(D, max_len=max_len)

    # Eval-mode forward (dropout = identity): check against pure-JAX reference.
    out_eval = jax.block_until_ready(
        positional_encoding(x, pe_table, dropout_p=0.1, training=False))
    ref = x + pe_table[:S]
    np.testing.assert_allclose(np.asarray(out_eval), np.asarray(ref),
                               rtol=1e-6, atol=1e-6)

    # Multi-block grid with a partial last seq tile (forced small tile).
    S2 = 20
    x_b = jax.random.normal(jax.random.PRNGKey(1), (S2, B, D), dtype=jnp.float32)
    out_b = jax.block_until_ready(
        positional_encoding(x_b, pe_table, training=False, seq_tile=8))
    ref_b = x_b + pe_table[:S2]
    np.testing.assert_allclose(np.asarray(out_b), np.asarray(ref_b),
                               rtol=1e-6, atol=1e-6)

    # Training-mode forward: inverted dropout with a deterministic seed.
    p = 0.1
    out_tr = jax.block_until_ready(
        positional_encoding(x, pe_table, dropout_p=p, training=True, seed=123))
    assert out_tr.shape == (S, B, D)
    y_np = np.asarray(x + pe_table[:S])
    out_np = np.asarray(out_tr)
    kept = out_np != 0.0
    np.testing.assert_allclose(out_np[kept], (y_np / (1.0 - p))[kept],
                               rtol=1e-5, atol=1e-5)
    assert kept.mean() > 0.5   # expected keep rate ~0.9

    print("KERNEL_OK")
</pallas_src>

<mosaic_0001>
module attributes {stable_mosaic.version = 11 : i64} {
  func.func @_pe_add_kernel(%arg0: i32, %arg1: memref<8x64xf32, #tpu.memory_space<vmem>>, %arg2: memref<8x32xf32, #tpu.memory_space<vmem>>, %arg3: memref<8x64xf32, #tpu.memory_space<vmem>>) attributes {dimension_semantics = [#tpu.dimension_semantics<parallel>], iteration_bounds = array<i64: 1>, scalar_prefetch = 0 : i64, scratch_operands = 0 : i64, tpu.core_type = #tpu.core_type<tc>, window_params = [{transform_indices = @transform_0, window_bounds = array<i64: 8, 64>}, {transform_indices = @transform_1, window_bounds = array<i64: 8, 32>}, {transform_indices = @transform_2, window_bounds = array<i64: 8, 64>}]} {
    %c0 = arith.constant 0 : index
    %c0_0 = arith.constant 0 : index
    %0 = vector.load %arg1[%c0, %c0_0] : memref<8x64xf32, #tpu.memory_space<vmem>>, vector<8x64xf32>
    %c0_1 = arith.constant 0 : index
    %c0_2 = arith.constant 0 : index
    %1 = vector.load %arg2[%c0_1, %c0_2] : memref<8x32xf32, #tpu.memory_space<vmem>>, vector<8x32xf32>
    %2 = tpu.concatenate %1, %1 in 1 : vector<8x32xf32>, vector<8x32xf32> -> vector<8x64xf32>
    %3 = arith.addf %0, %2 : vector<8x64xf32>
    %c0_3 = arith.constant 0 : index
    %c0_4 = arith.constant 0 : index
    %4 = vector.load %arg3[%c0_3, %c0_4] : memref<8x64xf32, #tpu.memory_space<vmem>>, vector<8x64xf32>
    tpu.vector_store %arg3[%c0_3, %c0_4], %3 {strides = array<i32>} : memref<8x64xf32, #tpu.memory_space<vmem>>, vector<8x64xf32>,
    return
  }
  func.func @transform_0(%arg0: i32) -> (i32, i32) {
    %c0_i32 = arith.constant 0 : i32
    %c0_i32_0 = arith.constant 0 : i32
    return %arg0, %c0_i32 : i32, i32
  }
  func.func @transform_1(%arg0: i32) -> (i32, i32) {
    %c0_i32 = arith.constant 0 : i32
    %c0_i32_0 = arith.constant 0 : i32
    return %arg0, %c0_i32 : i32, i32
  }
  func.func @transform_2(%arg0: i32) -> (i32, i32) {
    %c0_i32 = arith.constant 0 : i32
    %c0_i32_0 = arith.constant 0 : i32
    return %arg0, %c0_i32 : i32, i32
  }
}

</mosaic_0001>

<llo_original>
// kernel: tpu_custom_call.1
$region0: #{tpu_custom_call.1}
  #allocation0 [shape = 'u32[]', space=smem, size = 0x4, offset = 0x4, fixed_abs, tag = 'smem constant byte address 0x4 - core index']
  #allocation1 [shape = 'u32[144,128]{1,0:T(1,128)}', space=vmem, size = 0x12000, scoped, tag = 'internal scratch']
  %s0 = inlined_call_operand.hbm [shape: f32[8,64], index: 0, kind: input, shape index: {}]
  %s1 = inlined_call_operand.hbm [shape: f32[8,32], index: 1, kind: input, shape index: {}]
  %s2 = inlined_call_operand.hbm [shape: f32[8,64], index: 2, kind: output, shape index: {}]
  %s3 = sld [smem:[#allocation0]]
  $region26: #{tpu_custom_call.1} parent=0
    _
  %s5 = ssub.s32 1, %s3
  %s6 = scalar_select 0, %s5, %s3
  $region1: #{tpu_custom_call.1} parent=0
    #allocation2 [shape = 'u8[4096]{0}', space=vmem, size = 0x1000, scoped, tag = 'input window, operand 0, single buffered']
    #allocation3 [shape = 's32[1]{0}', space=sflag, size = 0x4, scoped, tag = 'scoped memory for tpu_custom_call.1']
    #allocation4 [shape = 's32[1]{0}', space=sflag, size = 0x4, scoped, tag = 'scoped memory for tpu_custom_call.1']
    #allocation5 [shape = 'u8[4096]{0}', space=vmem, size = 0x1000, scoped, tag = 'input window, operand 1, single buffered']
    #allocation6 [shape = 's32[1]{0}', space=sflag, size = 0x4, scoped, tag = 'scoped memory for tpu_custom_call.1']
    #allocation7 [shape = 'u8[4096]{0}', space=vmem, size = 0x1000, scoped, tag = 'output window, operand 0, single buffered']
    %7 = vsyncpa [#allocation3], 0
    %8 = vsyncpa [#allocation6], 0
    %9 = vsyncpa [#allocation4], 0
    // Predicated region
    $region2: #{tpu_custom_call.1} parent=1 // pred_check
      _
    $region3: #{tpu_custom_call.1} parent=1 // pred_check_branch
      %11 = sbr.rel (0) target = $region5
    $region4: #{tpu_custom_call.1} parent=1 // pred_region
      %s13 = ssub.s32 128, 128
      %14 = vsyncadd [#allocation3], %s13
      %s16 = sshll.u32 [#allocation2], 4
      %s17 = int_to_ptr.vmem [resolvable:$true] %s16
      %19 = dma.hbm_to_vmem [thread:$0]  %s0, 128, %s17, [#allocation3]
    $region5: #{tpu_custom_call.1} parent=1 // pred_fallthru
      _
    // Predicated region
    $region6: #{tpu_custom_call.1} parent=1 // pred_check
      _
    $region7: #{tpu_custom_call.1} parent=1 // pred_check_branch
      %21 = sbr.rel (0) target = $region9
    $region8: #{tpu_custom_call.1} parent=1 // pred_region
      %s23 = ssub.s32 128, 128
      %24 = vsyncadd [#allocation6], %s23
      %s26 = sshll.u32 [#allocation5], 4
      %s27 = int_to_ptr.vmem [resolvable:$true] %s26
      %29 = dma.hbm_to_vmem [thread:$0]  %s1, 128, %s27, [#allocation6]
    $region9: #{tpu_custom_call.1} parent=1 // pred_fallthru
      _
    // Predicated region
    $region10: #{tpu_custom_call.1} parent=1 // pred_check
      _
    $region11: #{tpu_custom_call.1} parent=1 // pred_check_branch
      %31 = sbr.rel (0) target = $region13
    $region12: #{tpu_custom_call.1} parent=1 // pred_region
      %32 = dma.done [#allocation3], 128
    $region13: #{tpu_custom_call.1} parent=1 // pred_fallthru
      _
    // Predicated region
    $region14: #{tpu_custom_call.1} parent=1 // pred_check
      _
    $region15: #{tpu_custom_call.1} parent=1 // pred_check_branch
      %34 = sbr.rel (0) target = $region17
    $region16: #{tpu_custom_call.1} parent=1 // pred_region
      %35 = dma.done [#allocation6], 128
    $region17: #{tpu_custom_call.1} parent=1 // pred_fallthru
      _
    %v36 = vld [vmem:[#allocation2] sm:$0xff]
    %v37 = vld [vmem:[#allocation5] sm:$0xff]
    %39 = vrot.lane.b32.xlu0 %v37, 32
    %v40 = vpop.permute.xlu0 %39
    %vm42 = vcmask 261120
    %v43 = vsel %vm42, %v37, %v40
    %v44 = vadd.f32 %v36, %v43
    %vm45 = vcmask 523264
    %46 = vst.msk [vmem:[#allocation7] sm:$0xff] %vm45, %v44
    // Predicated region
    $region18: #{tpu_custom_call.1} parent=1 // pred_check
      _
    $region19: #{tpu_custom_call.1} parent=1 // pred_check_branch
      %48 = sbr.rel (0) target = $region21
    $region20: #{tpu_custom_call.1} parent=1 // pred_region
      %s50 = ssub.s32 128, 128
      %51 = vsyncadd [#allocation4], %s50
      %s53 = sshll.u32 [#allocation7], 4
      %s54 = int_to_ptr.vmem [resolvable:$true] %s53
      %56 = dma.vmem_to_hbm [thread:$0]  %s54, 128, %s2, [#allocation4]
    $region21: #{tpu_custom_call.1} parent=1 // pred_fallthru
      _
    // Predicated region
    $region22: #{tpu_custom_call.1} parent=1 // pred_check
      _
    $region23: #{tpu_custom_call.1} parent=1 // pred_check_branch
      %58 = sbr.rel (0) target = $region25
    $region24: #{tpu_custom_call.1} parent=1 // pred_region
      %59 = dma.done [#allocation4], 128
    $region25: #{tpu_custom_call.1} parent=1 // pred_fallthru
      _
    %60 = vsyncpa [#allocation3], 1
    %61 = vsyncpa [#allocation6], 1
    %62 = vsyncpa [#allocation4], 1

</llo_original>
